<compile_context>
chip_gen: v5e
topology: v5e:2x2
jax: 0.10.0
libtpu: 0.0.40
codegen_flags: <defaults>
</compile_context>

<pallas_src>
import jax
import jax.numpy as jnp
from jax import lax
from jax.experimental import pallas as pl
from jax.experimental.pallas import tpu as pltpu


def _round_up(x, m):
    return (x + m - 1) // m * m


def _vmem_budgets():
    """Generation-aware VMEM budgets (v5e/v6e: 128 MiB physical, v7x: 64 MiB)."""
    cap = 64 * 1024 * 1024
    try:
        cap = int(getattr(pltpu.get_tpu_info(), "vmem_capacity_bytes", cap))
    except Exception:
        pass
    vmem_limit = min(cap * 3 // 4, 112 * 1024 * 1024)   # scoped limit we request
    tile_budget = cap // 2                              # budget for live tiles
    return vmem_limit, tile_budget


_VMEM_LIMIT, _TILE_BUDGET = _vmem_budgets()


# Numerically-stable activations shared by the kernel and the JAX reference
# (basic exp/log/abs/max ops only -> robust Mosaic lowering).
def _softplus(x):
    return jnp.maximum(x, 0.0) + jnp.log(1.0 + jnp.exp(-jnp.abs(x)))


def _sigmoid(x):
    return 1.0 / (1.0 + jnp.exp(-x))


# ----------------------------------------------------------------------------
# Kernel 1: encoder patch-embed matmul + bias, gridded over the row axis.
# ----------------------------------------------------------------------------
def _mm_bias_kernel(a_ref, b_ref, bias_ref, o_ref):
    acc = jnp.dot(a_ref[...], b_ref[...],
                  preferred_element_type=jnp.float32,
                  precision=lax.Precision.HIGHEST)
    o_ref[...] = (acc + bias_ref[...]).astype(o_ref.dtype)


def matmul_bias(a, b, bias, tm=256):
    """a: (M, K), b: (K, N), bias: (1, N) -> (M, N) f32, tiled over M."""
    M, K = a.shape
    K2, N = b.shape
    assert K == K2
    tm = min(tm, _round_up(M, 8))
    m_pad = _round_up(M, tm)
    if m_pad != M:
        a = jnp.pad(a, ((0, m_pad - M), (0, 0)))
    out = pl.pallas_call(
        _mm_bias_kernel,
        out_shape=jax.ShapeDtypeStruct((m_pad, N), jnp.float32),
        grid=(m_pad // tm,),
        in_specs=[
            pl.BlockSpec((tm, K), lambda i: (i, 0)),
            pl.BlockSpec((K, N), lambda i: (0, 0)),
            pl.BlockSpec((1, N), lambda i: (0, 0)),
        ],
        out_specs=pl.BlockSpec((tm, N), lambda i: (i, 0)),
        compiler_params=pltpu.CompilerParams(
            dimension_semantics=("parallel",),
            vmem_limit_bytes=_VMEM_LIMIT,
        ),
    )(a, b, bias)
    return out[:M] if m_pad != M else out


# ----------------------------------------------------------------------------
# Kernel 2: fused decoder head + activations + nearest upsample + post-process.
# Reads per-PATCH features, writes per-PIXEL outputs in a blocked-row layout
# (B, C, nh, P, W) whose reshape to NCHW is free.
# ----------------------------------------------------------------------------
def _decoder_fused_kernel(feats_ref, w_ref, b_ref,
                          pts_ref, dep_ref, dist_ref, rays_ref, conf_ref):
    rp, nw = feats_ref.shape[1], feats_ref.shape[2]
    P, W = pts_ref.shape[3], pts_ref.shape[4]

    # 0/1 nearest-neighbour column-replication matrix built from iota compares
    # (no HBM input stream, no resident VMEM): rep[n, x] = 1 iff x // P == n.
    col = lax.broadcasted_iota(jnp.int32, (nw, W), 1)
    row = lax.broadcasted_iota(jnp.int32, (nw, W), 0)
    rep = jnp.where((col >= row * P) & (col < row * P + P),
                    1.0, 0.0).astype(jnp.float32)                 # (nw, W)

    for r in range(rp):                 # static unroll; rp bounded by _choose_rp
        fe = feats_ref[0, r]                                       # (nw, E)
        # head = w^T @ fe^T without any relayout: contract the E (last) dims of
        # both operands -> (5, nw), MXU output stays lane-dense (lane = nw).
        head = lax.dot_general(
            w_ref[...], fe, (((1,), (1,)), ((), ())),
            preferred_element_type=jnp.float32,
            precision=lax.Precision.HIGHEST) + b_ref[...]          # (5, nw)
        # nearest-neighbour patch->pixel column upsample as a 0/1 MXU matmul.
        up = jnp.dot(head, rep, preferred_element_type=jnp.float32,
                     precision=lax.Precision.HIGHEST)              # (5, W)

        rays_raw = up[0:3]                                         # (3, W)
        dist = _softplus(up[3:4])                                  # (1, W)
        conf = _sigmoid(up[4:5])                                   # (1, W)

        pts = rays_raw * dist                                      # (3, W)
        s = pts[0:1] * pts[0:1] + pts[1:2] * pts[1:2] + pts[2:3] * pts[2:3]
        norm = jnp.sqrt(s)                                         # EUP
        inv = lax.rsqrt(jnp.maximum(s, 1e-10))   # == 1 / max(sqrt(s), 1e-5)
        rays_u = pts * inv                                         # no divides

        # nearest-neighbour ROW replication is a sublane broadcast straight
        # into the (.., P, W) output block slabs (stores stay lane-dense).
        pts_ref[0, :, r] = jnp.broadcast_to(pts[:, None, :], (3, P, W))
        dep_ref[0, :, r] = jnp.broadcast_to(pts[2:3][:, None, :], (1, P, W))
        dist_ref[0, :, r] = jnp.broadcast_to(norm[:, None, :], (1, P, W))
        rays_ref[0, :, r] = jnp.broadcast_to(rays_u[:, None, :], (3, P, W))
        conf_ref[0, :, r] = jnp.broadcast_to(conf[:, None, :], (1, P, W))


def _choose_rp(nh, nw, patch, W, E, budget_bytes, max_unroll=8):
    """Patch rows per grid step: largest divisor of nh (capped to keep the
    static unroll small) whose double-buffered per-step footprint fits the
    generation-aware VMEM budget.  Block legality is automatic because the
    output blocks carry the full (patch, W) minor dims."""
    nw_pad = _round_up(nw, 8)
    e_pad = _round_up(E, 128)
    p_pad = _round_up(patch, 8)
    w_pad = _round_up(W, 128)
    best = 1
    for rp in range(2, min(nh, max_unroll) + 1):
        if nh % rp:
            continue
        feat_bytes = rp * nw_pad * e_pad * 4
        out_bytes = 9 * rp * p_pad * w_pad * 4          # 3+1+1+3+1 channels
        if 2 * (feat_bytes + out_bytes) <= budget_bytes:
            best = rp
    return best


def decoder_fused(feats, w_head, b_head, patch, H, W):
    """feats: (B, nh, nw, E) per-patch features.
    Returns points (B,3,H,W), depth (B,1,H,W), distance (B,1,H,W),
    rays (B,3,H,W), confidence (B,1,H,W)."""
    B, nh, nw, E = feats.shape
    P = patch
    assert H == nh * P and W == nw * P and w_head.shape == (E, 5)
    rp = _choose_rp(nh, nw, P, W, E, _TILE_BUDGET)
    grid = (B, nh // rp)

    w_t = jnp.transpose(w_head)          # (5, E): tiny one-time transform
    b_t = b_head.reshape(5, 1)           # (5, 1)

    feat_spec = pl.BlockSpec((1, rp, nw, E), lambda b, t: (b, t, 0, 0))
    w_spec = pl.BlockSpec((5, E), lambda b, t: (0, 0))
    b_spec = pl.BlockSpec((5, 1), lambda b, t: (0, 0))
    o3 = pl.BlockSpec((1, 3, rp, P, W), lambda b, t: (b, 0, t, 0, 0))
    o1 = pl.BlockSpec((1, 1, rp, P, W), lambda b, t: (b, 0, t, 0, 0))

    out_shapes = (
        jax.ShapeDtypeStruct((B, 3, nh, P, W), jnp.float32),   # points
        jax.ShapeDtypeStruct((B, 1, nh, P, W), jnp.float32),   # depth
        jax.ShapeDtypeStruct((B, 1, nh, P, W), jnp.float32),   # distance
        jax.ShapeDtypeStruct((B, 3, nh, P, W), jnp.float32),   # rays
        jax.ShapeDtypeStruct((B, 1, nh, P, W), jnp.float32),   # confidence
    )
    pts, dep, dist, rays, conf = pl.pallas_call(
        _decoder_fused_kernel,
        out_shape=out_shapes,
        grid=grid,
        in_specs=[feat_spec, w_spec, b_spec],
        out_specs=(o3, o1, o1, o3, o1),
        compiler_params=pltpu.CompilerParams(
            dimension_semantics=("parallel", "parallel"),
            vmem_limit_bytes=_VMEM_LIMIT,
        ),
    )(feats, w_t, b_t)
    # (B, c, nh, P, W) -> (B, c, H, W): contiguous row merge, free in XLA.
    return (pts.reshape(B, 3, H, W), dep.reshape(B, 1, H, W),
            dist.reshape(B, 1, H, W), rays.reshape(B, 3, H, W),
            conf.reshape(B, 1, H, W))


# ----------------------------------------------------------------------------
# Synthetic UniK3D forward (inference path), NCHW in / NCHW out.
# ----------------------------------------------------------------------------
class UniK3DPallas:
    def __init__(self, embed_dim=32, patch=4, in_ch=3, key=jax.random.PRNGKey(42)):
        self.embed_dim = embed_dim
        self.patch = patch
        self.in_ch = in_ch
        k1, k2 = jax.random.split(key)
        fan_in = in_ch * patch * patch
        self.w_embed = (jax.random.normal(k1, (fan_in, embed_dim), jnp.float32)
                        * (1.0 / jnp.sqrt(fan_in)))
        self.b_embed = jnp.zeros((1, embed_dim), jnp.float32)
        self.w_head = (jax.random.normal(k2, (embed_dim, 5), jnp.float32)
                       * (1.0 / jnp.sqrt(embed_dim)))
        self.b_head = jnp.zeros((1, 5), jnp.float32)

    def __call__(self, image):
        """image: (B, 3, H, W) float32 NCHW (like the PyTorch module)."""
        B, C, H, W = image.shape
        P, E = self.patch, self.embed_dim
        assert C == self.in_ch and H % P == 0 and W % P == 0
        nh, nw = H // P, W // P

        # pixel_encoder (synthetic patch-embed): XLA-side patch extraction +
        # gridded matmul kernel.
        # TODO(synk): fuse this extraction into kernel 1 (in-VMEM rearrange)
        # to save an image HBM round trip at real resolutions.
        patches = image.reshape(B, C, nh, P, nw, P)
        patches = jnp.transpose(patches, (0, 2, 4, 1, 3, 5)).reshape(
            B * nh * nw, C * P * P)
        feats = matmul_bias(patches, self.w_embed, self.b_embed)   # (B*nh*nw, E)
        feats = feats.reshape(B, nh, nw, E)

        # fused decoder head + activations + nearest upsample + post-process
        points, depth, distance, rays, confidence = decoder_fused(
            feats, self.w_head, self.b_head, P, H, W)

        return {
            "points": points,
            "depth": depth,            # points[:, -1:], written in-kernel
            "distance": distance,
            "rays": rays,
            "confidence": confidence,
        }


# ----------------------------------------------------------------------------
# Pure-JAX reference of the same synthetic forward (per-pixel formulation).
# ----------------------------------------------------------------------------
def reference_forward(model, image):
    B, C, H, W = image.shape
    P, E = model.patch, model.embed_dim
    nh, nw = H // P, W // P
    patches = image.reshape(B, C, nh, P, nw, P)
    patches = jnp.transpose(patches, (0, 2, 4, 1, 3, 5)).reshape(B * nh * nw, C * P * P)
    feats = patches @ model.w_embed + model.b_embed
    feats = feats.reshape(B, nh, nw, E)
    feats = jnp.repeat(jnp.repeat(feats, P, axis=1), P, axis=2).reshape(B * H * W, E)
    head = (feats @ model.w_head + model.b_head).reshape(B, H * W, 5)
    head = jnp.transpose(head, (0, 2, 1))
    rays_raw = head[:, 0:3, :]
    distance = _softplus(head[:, 3:4, :])
    confidence = _sigmoid(head[:, 4:5, :])
    points = rays_raw * distance
    depth = points[:, 2:3, :]
    dnorm = jnp.linalg.norm(points, axis=1, keepdims=True)
    rays_unit = points / jnp.maximum(dnorm, 1e-5)
    return {
        "points": points.reshape(B, 3, H, W),
        "depth": depth.reshape(B, 1, H, W),
        "distance": dnorm.reshape(B, 1, H, W),
        "rays": rays_unit.reshape(B, 3, H, W),
        "confidence": confidence.reshape(B, 1, H, W),
    }


if __name__ == "__main__":
    # Keep the XLA reference matmuls at full f32 precision so the comparison
    # against the HIGHEST-precision in-kernel dots is apples-to-apples.
    jax.config.update("jax_default_matmul_precision", "highest")

    key = jax.random.PRNGKey(0)
    B, C, H, W = 2, 3, 16, 16
    image = jax.random.normal(key, (B, C, H, W), jnp.float32)

    model = UniK3DPallas(embed_dim=32, patch=4, in_ch=C, key=jax.random.PRNGKey(42))

    out = model(image)
    jax.block_until_ready(out)

    ref = reference_forward(model, image)
    for k in ("points", "depth", "distance", "rays", "confidence"):
        assert out[k].shape == ref[k].shape, (k, out[k].shape, ref[k].shape)
        assert jnp.allclose(out[k], ref[k], rtol=1e-3, atol=1e-3), f"mismatch in {k}"

    print("KERNEL_OK")
</pallas_src>

<mosaic_0001>
module attributes {stable_mosaic.version = 11 : i64} {
  func.func @_mm_bias_kernel(%arg0: i32, %arg1: memref<32x48xf32, #tpu.memory_space<vmem>>, %arg2: memref<48x32xf32, #tpu.memory_space<vmem>>, %arg3: memref<1x32xf32, #tpu.memory_space<vmem>>, %arg4: memref<32x32xf32, #tpu.memory_space<vmem>>) attributes {dimension_semantics = [#tpu.dimension_semantics<parallel>], iteration_bounds = array<i64: 1>, scalar_prefetch = 0 : i64, scratch_operands = 0 : i64, tpu.core_type = #tpu.core_type<tc>, window_params = [{transform_indices = @transform_0, window_bounds = array<i64: 32, 48>}, {pipeline_mode = #tpu.pipeline_mode<synchronous>, transform_indices = @transform_1, window_bounds = array<i64: 48, 32>}, {pipeline_mode = #tpu.pipeline_mode<synchronous>, transform_indices = @transform_2, window_bounds = array<i64: 1, 32>}, {transform_indices = @transform_3, window_bounds = array<i64: 32, 32>}]} {
    %c0 = arith.constant 0 : index
    %c0_0 = arith.constant 0 : index
    %0 = vector.load %arg1[%c0, %c0_0] : memref<32x48xf32, #tpu.memory_space<vmem>>, vector<32x48xf32>
    %c0_1 = arith.constant 0 : index
    %c0_2 = arith.constant 0 : index
    %1 = vector.load %arg2[%c0_1, %c0_2] : memref<48x32xf32, #tpu.memory_space<vmem>>, vector<48x32xf32>
    %cst = arith.constant dense<0.000000e+00> : vector<32x32xf32>
    %2 = tpu.matmul %0, %1, %cst {dimension_numbers = #tpu.dot_dimension_numbers<[1], [0], [0], [1], [0, 0, 1, 1], [], []>, precision = #tpu.contract_precision<fp32>} : vector<32x48xf32>, vector<48x32xf32>, vector<32x32xf32> -> vector<32x32xf32>
    %c0_3 = arith.constant 0 : index
    %c0_4 = arith.constant 0 : index
    %3 = vector.load %arg3[%c0_3, %c0_4] : memref<1x32xf32, #tpu.memory_space<vmem>>, vector<1x32xf32>
    %4 = vector.broadcast %3 : vector<1x32xf32> to vector<32x32xf32>
    %5 = arith.addf %2, %4 : vector<32x32xf32>
    %c0_5 = arith.constant 0 : index
    %c0_6 = arith.constant 0 : index
    %6 = vector.load %arg4[%c0_5, %c0_6] : memref<32x32xf32, #tpu.memory_space<vmem>>, vector<32x32xf32>
    tpu.vector_store %arg4[%c0_5, %c0_6], %5 {strides = array<i32>} : memref<32x32xf32, #tpu.memory_space<vmem>>, vector<32x32xf32>,
    return
  }
  func.func @transform_0(%arg0: i32) -> (i32, i32) {
    %c0_i32 = arith.constant 0 : i32
    %c0_i32_0 = arith.constant 0 : i32
    return %arg0, %c0_i32 : i32, i32
  }
  func.func @transform_1(%arg0: i32) -> (i32, i32) {
    %c0_i32 = arith.constant 0 : i32
    %c0_i32_0 = arith.constant 0 : i32
    %c0_i32_1 = arith.constant 0 : i32
    return %c0_i32, %c0_i32_0 : i32, i32
  }
  func.func @transform_2(%arg0: i32) -> (i32, i32) {
    %c0_i32 = arith.constant 0 : i32
    %c0_i32_0 = arith.constant 0 : i32
    %c0_i32_1 = arith.constant 0 : i32
    return %c0_i32, %c0_i32_0 : i32, i32
  }
  func.func @transform_3(%arg0: i32) -> (i32, i32) {
    %c0_i32 = arith.constant 0 : i32
    %c0_i32_0 = arith.constant 0 : i32
    return %arg0, %c0_i32 : i32, i32
  }
}

</mosaic_0001>

<llo_original>
// kernel: tpu_custom_call.1
$region0: #{tpu_custom_call.1}
  #allocation0 [shape = 'u32[]', space=smem, size = 0x4, offset = 0x4, fixed_abs, tag = 'smem constant byte address 0x4 - core index']
  #allocation1 [shape = 'u32[72,128]{1,0:T(1,128)}', space=vmem, size = 0x9000, scoped, tag = 'internal scratch']
  %s0 = inlined_call_operand.vmem [shape: f32[32,48], index: 0, kind: input, shape index: {}]
  %s1 = inlined_call_operand.vmem [shape: f32[48,32], index: 1, kind: input, shape index: {}]
  %s2 = inlined_call_operand.vmem [shape: f32[1,32], index: 2, kind: input, shape index: {}]
  %s3 = inlined_call_operand.hbm [shape: f32[32,32], index: 3, kind: output, shape index: {}]
  %s4 = sld [smem:[#allocation0]]
  $region22: #{tpu_custom_call.1} parent=0
    _
  %s6 = ssub.s32 1, %s4
  %s7 = scalar_select 0, %s6, %s4
  $region1: #{tpu_custom_call.1} parent=0
    #allocation2 [shape = 'u8[16384]{0}', space=vmem, size = 0x4000, scoped, tag = 'output window, operand 0, single buffered']
    #allocation3 [shape = 's32[1]{0}', space=sflag, size = 0x4, scoped, tag = 'scoped memory for tpu_custom_call.1']
    %8 = vsyncpa [#allocation3], 0
    // Predicated region
    $region2: #{tpu_custom_call.1} parent=1 // pred_check
      _
    $region3: #{tpu_custom_call.1} parent=1 // pred_check_branch
      %10 = sbr.rel (0) target = $region5
    $region4: #{tpu_custom_call.1} parent=1 // pred_region
      _
    $region5: #{tpu_custom_call.1} parent=1 // pred_fallthru
      _
    // Predicated region
    $region6: #{tpu_custom_call.1} parent=1 // pred_check
      _
    $region7: #{tpu_custom_call.1} parent=1 // pred_check_branch
      %12 = sbr.rel (0) target = $region9
    $region8: #{tpu_custom_call.1} parent=1 // pred_region
      _
    $region9: #{tpu_custom_call.1} parent=1 // pred_fallthru
      _
    // Predicated region
    $region10: #{tpu_custom_call.1} parent=1 // pred_check
      _
    $region11: #{tpu_custom_call.1} parent=1 // pred_check_branch
      %14 = sbr.rel (0) target = $region13
    $region12: #{tpu_custom_call.1} parent=1 // pred_region
      _
    $region13: #{tpu_custom_call.1} parent=1 // pred_fallthru
      _
    %v15 = vld [vmem:[%s0] sm:$0xff]
    %v16 = vld [vmem:[%s0 + $0x8] sm:$0xff]
    %v17 = vld [vmem:[%s0 + $0x10] sm:$0xff]
    %v18 = vld [vmem:[%s0 + $0x18] sm:$0xff]
    %v19 = vld [vmem:[%s1] sm:$0xff]
    %v20 = vld [vmem:[%s1 + $0x8] sm:$0xff]
    %v21 = vld [vmem:[%s1 + $0x10] sm:$0xff]
    %v22 = vld [vmem:[%s1 + $0x18] sm:$0xff]
    %v23 = vld [vmem:[%s1 + $0x20] sm:$0xff]
    %v24 = vld [vmem:[%s1 + $0x28] sm:$0xff]
    %v25 = vld [vmem:[%s2] sm:$0x1]
    %v27 = vperm.slane %v25, 0
    %vm29 = vcmask 392192
    %v31 = vsel %vm29, %v15, 0
    %v34 = vsel %vm29, %v16, 0
    %v37 = vsel %vm29, %v17, 0
    %v40 = vsel %vm29, %v18, 0
    %42 = vmatpush.msra.mxu0 0.0
    %43 = vmatpush.msra.mxu0 0.0
    %44 = vmatpush.msra.mxu0 0.0
    %45 = vmatpush.msra.mxu0 0.0
    %46 = vmatpush.msra.mxu0 0.0
    %47 = vmatpush.msra.mxu0 0.0
    %48 = vmatpush.msra.mxu0 0.0
    %49 = vmatpush.msra.mxu0 0.0
    %50 = vmatpush.msra.mxu0 0.0
    %51 = vmatpush.msra.mxu0 0.0
    %v52 = vand.u32 %v24, 4294901760
    %53 = vmatpush.msra.mxu0 %v52
    %v54 = vand.u32 %v23, 4294901760
    %55 = vmatpush.msra.mxu0 %v54
    %v56 = vand.u32 %v22, 4294901760
    %57 = vmatpush.msra.mxu0 %v56
    %v58 = vand.u32 %v21, 4294901760
    %59 = vmatpush.msra.mxu0 %v58
    %v60 = vand.u32 %v20, 4294901760
    %61 = vmatpush.msra.mxu0 %v60
    %v62 = vand.u32 %v19, 4294901760
    %63 = vmatpush.msra.mxu0 %v62
    %v64 = vand.u32 %v31, 4294901760
    %v65 = vsub.f32 %v31, %v64
    %v66 = vand.u32 %v65, 4294901760
    %v67 = vsub.f32 %v65, %v66
    %v68 = vand.u32 %v67, 4294901760
    %69 = vmatmul.f32.gmra.mxu0 %v68
    %v70 = vpop.f32.mrf.mxu0
    %v71 = vadd.f32 %v27, %v70
    %v72 = vand.u32 %v34, 4294901760
    %v73 = vsub.f32 %v34, %v72
    %v74 = vand.u32 %v73, 4294901760
    %v75 = vsub.f32 %v73, %v74
    %v76 = vand.u32 %v75, 4294901760
    %77 = vmatmul.f32.gmra.mxu0 %v76
    %v78 = vpop.f32.mrf.mxu0
    %v79 = vadd.f32 %v27, %v78
    %v80 = vand.u32 %v37, 4294901760
    %v81 = vsub.f32 %v37, %v80
    %v82 = vand.u32 %v81, 4294901760
    %v83 = vsub.f32 %v81, %v82
    %v84 = vand.u32 %v83, 4294901760
    %85 = vmatmul.f32.gmra.mxu0 %v84
    %v86 = vpop.f32.mrf.mxu0
    %v87 = vadd.f32 %v27, %v86
    %v88 = vand.u32 %v40, 4294901760
    %v89 = vsub.f32 %v40, %v88
    %v90 = vand.u32 %v89, 4294901760
    %v91 = vsub.f32 %v89, %v90
    %v92 = vand.u32 %v91, 4294901760
    %93 = vmatmul.f32.gmra.mxu0 %v92
    %v94 = vpop.f32.mrf.mxu0
    %v95 = vadd.f32 %v27, %v94
    %96 = vdwg.mxu0
    %97 = vmatpush.msra.mxu0 0.0
    %98 = vmatpush.msra.mxu0 0.0
    %99 = vmatpush.msra.mxu0 0.0
    %100 = vmatpush.msra.mxu0 0.0
    %101 = vmatpush.msra.mxu0 0.0
    %102 = vmatpush.msra.mxu0 0.0
    %103 = vmatpush.msra.mxu0 0.0
    %104 = vmatpush.msra.mxu0 0.0
    %105 = vmatpush.msra.mxu0 0.0
    %106 = vmatpush.msra.mxu0 0.0
    %v107 = vand.u32 %v24, 4294901760
    %v108 = vsub.f32 %v24, %v107
    %v109 = vand.u32 %v108, 4294901760
    %v110 = vsub.f32 %v108, %v109
    %v111 = vand.u32 %v110, 4294901760
    %112 = vmatpush.msra.mxu0 %v111
    %v113 = vand.u32 %v23, 4294901760
    %v114 = vsub.f32 %v23, %v113
    %v115 = vand.u32 %v114, 4294901760
    %v116 = vsub.f32 %v114, %v115
    %v117 = vand.u32 %v116, 4294901760
    %118 = vmatpush.msra.mxu0 %v117
    %v119 = vand.u32 %v22, 4294901760
    %v120 = vsub.f32 %v22, %v119
    %v121 = vand.u32 %v120, 4294901760
    %v122 = vsub.f32 %v120, %v121
    %v123 = vand.u32 %v122, 4294901760
    %124 = vmatpush.msra.mxu0 %v123
    %v125 = vand.u32 %v21, 4294901760
    %v126 = vsub.f32 %v21, %v125
    %v127 = vand.u32 %v126, 4294901760
    %v128 = vsub.f32 %v126, %v127
    %v129 = vand.u32 %v128, 4294901760
    %130 = vmatpush.msra.mxu0 %v129
    %v131 = vand.u32 %v20, 4294901760
    %v132 = vsub.f32 %v20, %v131
    %v133 = vand.u32 %v132, 4294901760
    %v134 = vsub.f32 %v132, %v133
    %v135 = vand.u32 %v134, 4294901760
    %136 = vmatpush.msra.mxu0 %v135
    %v137 = vand.u32 %v19, 4294901760
    %v138 = vsub.f32 %v19, %v137
    %v139 = vand.u32 %v138, 4294901760
    %v140 = vsub.f32 %v138, %v139
    %v141 = vand.u32 %v140, 4294901760
    %142 = vmatpush.msra.mxu0 %v141
    %v143 = vand.u32 %v31, 4294901760
    %144 = vmatmul.f32.gmra.mxu0 %v143
    %v145 = vpop.f32.mrf.mxu0
    %v146 = vadd.f32 %v71, %v145
    %v147 = vand.u32 %v34, 4294901760
    %148 = vmatmul.f32.gmra.mxu0 %v147
    %v149 = vpop.f32.mrf.mxu0
    %v150 = vadd.f32 %v79, %v149
    %v151 = vand.u32 %v37, 4294901760
    %152 = vmatmul.f32.gmra.mxu0 %v151
    %v153 = vpop.f32.mrf.mxu0
    %v154 = vadd.f32 %v87, %v153
    %v155 = vand.u32 %v40, 4294901760
    %156 = vmatmul.f32.gmra.mxu0 %v155
    %v157 = vpop.f32.mrf.mxu0
    %v158 = vadd.f32 %v95, %v157
    %159 = vdwg.mxu0
    %160 = vmatpush.msra.mxu0 0.0
    %161 = vmatpush.msra.mxu0 0.0
    %162 = vmatpush.msra.mxu0 0.0
    %163 = vmatpush.msra.mxu0 0.0
    %164 = vmatpush.msra.mxu0 0.0
    %165 = vmatpush.msra.mxu0 0.0
    %166 = vmatpush.msra.mxu0 0.0
    %167 = vmatpush.msra.mxu0 0.0
    %168 = vmatpush.msra.mxu0 0.0
    %169 = vmatpush.msra.mxu0 0.0
    %v170 = vand.u32 %v24, 4294901760
    %v171 = vsub.f32 %v24, %v170
    %172 = vmatpush.msra.mxu0 %v171
    %v173 = vand.u32 %v23, 4294901760
    %v174 = vsub.f32 %v23, %v173
    %175 = vmatpush.msra.mxu0 %v174
    %v176 = vand.u32 %v22, 4294901760
    %v177 = vsub.f32 %v22, %v176
    %178 = vmatpush.msra.mxu0 %v177
    %v179 = vand.u32 %v21, 4294901760
    %v180 = vsub.f32 %v21, %v179
    %181 = vmatpush.msra.mxu0 %v180
    %v182 = vand.u32 %v20, 4294901760
    %v183 = vsub.f32 %v20, %v182
    %184 = vmatpush.msra.mxu0 %v183
    %v185 = vand.u32 %v19, 4294901760
    %v186 = vsub.f32 %v19, %v185
    %187 = vmatpush.msra.mxu0 %v186
    %v188 = vand.u32 %v31, 4294901760
    %v189 = vsub.f32 %v31, %v188
    %190 = vmatmul.f32.gmra.mxu0 %v189
    %v191 = vpop.f32.mrf.mxu0
    %v192 = vadd.f32 %v146, %v191
    %v193 = vand.u32 %v34, 4294901760
    %v194 = vsub.f32 %v34, %v193
    %195 = vmatmul.f32.gmra.mxu0 %v194
    %v196 = vpop.f32.mrf.mxu0
    %v197 = vadd.f32 %v150, %v196
    %v198 = vand.u32 %v37, 4294901760
    %v199 = vsub.f32 %v37, %v198
    %200 = vmatmul.f32.gmra.mxu0 %v199
    %v201 = vpop.f32.mrf.mxu0
    %v202 = vadd.f32 %v154, %v201
    %v203 = vand.u32 %v40, 4294901760
    %v204 = vsub.f32 %v40, %v203
    %205 = vmatmul.f32.gmra.mxu0 %v204
    %v206 = vpop.f32.mrf.mxu0
    %v207 = vadd.f32 %v158, %v206
    %208 = vdwg.mxu0
    %209 = vmatpush.msra.mxu0 0.0
    %210 = vmatpush.msra.mxu0 0.0
    %211 = vmatpush.msra.mxu0 0.0
    %212 = vmatpush.msra.mxu0 0.0
    %213 = vmatpush.msra.mxu0 0.0
    %214 = vmatpush.msra.mxu0 0.0
    %215 = vmatpush.msra.mxu0 0.0
    %216 = vmatpush.msra.mxu0 0.0
    %217 = vmatpush.msra.mxu0 0.0
    %218 = vmatpush.msra.mxu0 0.0
    %v219 = vand.u32 %v24, 4294901760
    %220 = vmatpush.msra.mxu0 %v219
    %v221 = vand.u32 %v23, 4294901760
    %222 = vmatpush.msra.mxu0 %v221
    %v223 = vand.u32 %v22, 4294901760
    %224 = vmatpush.msra.mxu0 %v223
    %v225 = vand.u32 %v21, 4294901760
    %226 = vmatpush.msra.mxu0 %v225
    %v227 = vand.u32 %v20, 4294901760
    %228 = vmatpush.msra.mxu0 %v227
    %v229 = vand.u32 %v19, 4294901760
    %230 = vmatpush.msra.mxu0 %v229
    %v231 = vand.u32 %v31, 4294901760
    %v232 = vsub.f32 %v31, %v231
    %v233 = vand.u32 %v232, 4294901760
    %234 = vmatmul.f32.gmra.mxu0 %v233
    %v235 = vpop.f32.mrf.mxu0
    %v236 = vadd.f32 %v192, %v235
    %v237 = vand.u32 %v34, 4294901760
    %v238 = vsub.f32 %v34, %v237
    %v239 = vand.u32 %v238, 4294901760
    %240 = vmatmul.f32.gmra.mxu0 %v239
    %v241 = vpop.f32.mrf.mxu0
    %v242 = vadd.f32 %v197, %v241
    %v243 = vand.u32 %v37, 4294901760
    %v244 = vsub.f32 %v37, %v243
    %v245 = vand.u32 %v244, 4294901760
    %246 = vmatmul.f32.gmra.mxu0 %v245
    %v247 = vpop.f32.mrf.mxu0
    %v248 = vadd.f32 %v202, %v247
    %v249 = vand.u32 %v40, 4294901760
    %v250 = vsub.f32 %v40, %v249
    %v251 = vand.u32 %v250, 4294901760
    %252 = vmatmul.f32.gmra.mxu0 %v251
    %v253 = vpop.f32.mrf.mxu0
    %v254 = vadd.f32 %v207, %v253
    %255 = vdwg.mxu0
    %256 = vmatpush.msra.mxu0 0.0
    %257 = vmatpush.msra.mxu0 0.0
    %258 = vmatpush.msra.mxu0 0.0
    %259 = vmatpush.msra.mxu0 0.0
    %260 = vmatpush.msra.mxu0 0.0
    %261 = vmatpush.msra.mxu0 0.0
    %262 = vmatpush.msra.mxu0 0.0
    %263 = vmatpush.msra.mxu0 0.0
    %264 = vmatpush.msra.mxu0 0.0
    %265 = vmatpush.msra.mxu0 0.0
    %v266 = vand.u32 %v24, 4294901760
    %v267 = vsub.f32 %v24, %v266
    %v268 = vand.u32 %v267, 4294901760
    %269 = vmatpush.msra.mxu0 %v268
    %v270 = vand.u32 %v23, 4294901760
    %v271 = vsub.f32 %v23, %v270
    %v272 = vand.u32 %v271, 4294901760
    %273 = vmatpush.msra.mxu0 %v272
    %v274 = vand.u32 %v22, 4294901760
    %v275 = vsub.f32 %v22, %v274
    %v276 = vand.u32 %v275, 4294901760
    %277 = vmatpush.msra.mxu0 %v276
    %v278 = vand.u32 %v21, 4294901760
    %v279 = vsub.f32 %v21, %v278
    %v280 = vand.u32 %v279, 4294901760
    %281 = vmatpush.msra.mxu0 %v280
    %v282 = vand.u32 %v20, 4294901760
    %v283 = vsub.f32 %v20, %v282
    %v284 = vand.u32 %v283, 4294901760
    %285 = vmatpush.msra.mxu0 %v284
    %v286 = vand.u32 %v19, 4294901760
    %v287 = vsub.f32 %v19, %v286
    %v288 = vand.u32 %v287, 4294901760
    %289 = vmatpush.msra.mxu0 %v288
    %v290 = vand.u32 %v31, 4294901760
    %291 = vmatmul.f32.gmra.mxu0 %v290
    %v292 = vpop.f32.mrf.mxu0
    %v293 = vadd.f32 %v236, %v292
    %v294 = vand.u32 %v34, 4294901760
    %295 = vmatmul.f32.gmra.mxu0 %v294
    %v296 = vpop.f32.mrf.mxu0
    %v297 = vadd.f32 %v242, %v296
    %v298 = vand.u32 %v37, 4294901760
    %299 = vmatmul.f32.gmra.mxu0 %v298
    %v300 = vpop.f32.mrf.mxu0
    %v301 = vadd.f32 %v248, %v300
    %v302 = vand.u32 %v40, 4294901760
    %303 = vmatmul.f32.gmra.mxu0 %v302
    %v304 = vpop.f32.mrf.mxu0
    %v305 = vadd.f32 %v254, %v304
    %306 = vdwg.mxu0
    %307 = vmatpush.msra.mxu0 0.0
    %308 = vmatpush.msra.mxu0 0.0
    %309 = vmatpush.msra.mxu0 0.0
    %310 = vmatpush.msra.mxu0 0.0
    %311 = vmatpush.msra.mxu0 0.0
    %312 = vmatpush.msra.mxu0 0.0
    %313 = vmatpush.msra.mxu0 0.0
    %314 = vmatpush.msra.mxu0 0.0
    %315 = vmatpush.msra.mxu0 0.0
    %316 = vmatpush.msra.mxu0 0.0
    %v317 = vand.u32 %v24, 4294901760
    %318 = vmatpush.msra.mxu0 %v317
    %v319 = vand.u32 %v23, 4294901760
    %320 = vmatpush.msra.mxu0 %v319
    %v321 = vand.u32 %v22, 4294901760
    %322 = vmatpush.msra.mxu0 %v321
    %v323 = vand.u32 %v21, 4294901760
    %324 = vmatpush.msra.mxu0 %v323
    %v325 = vand.u32 %v20, 4294901760
    %326 = vmatpush.msra.mxu0 %v325
    %v327 = vand.u32 %v19, 4294901760
    %328 = vmatpush.msra.mxu0 %v327
    %v329 = vand.u32 %v31, 4294901760
    %330 = vmatmul.f32.gmra.mxu0 %v329
    %v331 = vpop.f32.mrf.mxu0
    %v332 = vadd.f32 %v293, %v331
    %v333 = vand.u32 %v34, 4294901760
    %334 = vmatmul.f32.gmra.mxu0 %v333
    %v335 = vpop.f32.mrf.mxu0
    %v336 = vadd.f32 %v297, %v335
    %v337 = vand.u32 %v37, 4294901760
    %338 = vmatmul.f32.gmra.mxu0 %v337
    %v339 = vpop.f32.mrf.mxu0
    %v340 = vadd.f32 %v301, %v339
    %v341 = vand.u32 %v40, 4294901760
    %342 = vmatmul.f32.gmra.mxu0 %v341
    %v343 = vpop.f32.mrf.mxu0
    %v344 = vadd.f32 %v305, %v343
    %345 = vdwg.mxu0
    %vm346 = vcmask 261120
    %347 = vst.msk [vmem:[#allocation2] sm:$0xff] %vm346, %v332
    %348 = vst.msk [vmem:[#allocation2 + $0x8] sm:$0xff] %vm346, %v336
    %349 = vst.msk [vmem:[#allocation2 + $0x10] sm:$0xff] %vm346, %v340
    %350 = vst.msk [vmem:[#allocation2 + $0x18] sm:$0xff] %vm346, %v344
    // Predicated region
    $region14: #{tpu_custom_call.1} parent=1 // pred_check
      _
    $region15: #{tpu_custom_call.1} parent=1 // pred_check_branch
      %352 = sbr.rel (0) target = $region17
    $region16: #{tpu_custom_call.1} parent=1 // pred_region
      %354 = vsyncadd [#allocation3], 0
      %s355 = sshll.u32 [#allocation2], 4
      %s356 = int_to_ptr.vmem [resolvable:$true] %s355
      %s357 = sshll.u32 %s3, 4
      %s358 = int_to_ptr.hbm [resolvable:$true] %s357
      %363 = dma.vmem_to_hbm [thread:$0]  %s356, 512, %s358, [#allocation3], 128, 128, 8
    $region17: #{tpu_custom_call.1} parent=1 // pred_fallthru
      _
    // Predicated region
    $region18: #{tpu_custom_call.1} parent=1 // pred_check
      _
    $region19: #{tpu_custom_call.1} parent=1 // pred_check_branch
      %365 = sbr.rel (0) target = $region21
    $region20: #{tpu_custom_call.1} parent=1 // pred_region
      %367 = dma.done [#allocation3], 512
    $region21: #{tpu_custom_call.1} parent=1 // pred_fallthru
      _
    %368 = vsyncpa [#allocation3], 1

</llo_original>
